<compile_context>
chip_gen: v6e
topology: v6e:2x2x1
jax: 0.10.0
libtpu: 0.0.40
codegen_flags: <defaults>
</compile_context>

<pallas_src>
import functools

import jax
import jax.numpy as jnp
from jax.experimental import pallas as pl
from jax.experimental.pallas import tpu as pltpu


def _round_up(x, m):
    return ((x + m - 1) // m) * m


def _nontext_embed_kernel(x_ref, w_ref, b_ref, g_ref, beta_ref, o_ref, *, eps):
    # x_ref:    (tm, F)  tile of flattened inputs
    # w_ref:    (F, H)   full linear weight (F x H layout), grid invariant
    # b_ref:    (1, H)   linear bias
    # g_ref:    (1, H)   LayerNorm weight (gamma)
    # beta_ref: (1, H)   LayerNorm bias (beta)
    # o_ref:    (tm, H)  output tile

    # MXU matmul in native storage dtype (bf16/f32), f32 accumulation.
    y = jnp.dot(x_ref[...], w_ref[...], preferred_element_type=jnp.float32)
    y = y + b_ref[...].astype(jnp.float32)

    # LayerNorm over hidden dim: biased variance, eps=1e-12 (torch semantics).
    mean = jnp.mean(y, axis=-1, keepdims=True)
    centered = y - mean
    var = jnp.mean(centered * centered, axis=-1, keepdims=True)
    inv = jax.lax.rsqrt(var + eps)                      # EUP, separate slot
    out = centered * inv * g_ref[...].astype(jnp.float32) \
        + beta_ref[...].astype(jnp.float32)

    # TODO(synk): training-mode dropout (hidden_dropout_prob) not applied; this
    # matches eval/inference where nn.Dropout is the identity. (Training would
    # use pltpu.prng_seed + pltpu.prng_random_bits masking inside this kernel.)
    o_ref[...] = out.astype(o_ref.dtype)


@functools.lru_cache(maxsize=None)
def _make_call(M, F, H, tm, out_dtype_name, eps, single_buffer_params,
               vmem_limit_bytes):
    kernel = functools.partial(_nontext_embed_kernel, eps=eps)
    out_dtype = jnp.dtype(out_dtype_name)

    if single_buffer_params:
        # Grid-invariant operands: constant index_map -> DMA'd once; request a
        # single buffer so the weight doesn't eat 2x VMEM at BERT-scale F/H.
        def param_spec(shape):
            return pl.BlockSpec(shape, lambda i: (0, 0),
                                pipeline_mode=pl.Buffered(1))
    else:
        def param_spec(shape):
            return pl.BlockSpec(shape, lambda i: (0, 0))

    grid_m = pl.cdiv(M, tm)

    return pl.pallas_call(
        kernel,
        out_shape=jax.ShapeDtypeStruct((M, H), out_dtype),
        grid_spec=pltpu.PrefetchScalarGridSpec(
            num_scalar_prefetch=0,
            grid=(grid_m,),
            in_specs=[
                pl.BlockSpec((tm, F), lambda i: (i, 0)),  # x tile (pipelined)
                param_spec((F, H)),                       # weight (invariant)
                param_spec((1, H)),                       # bias
                param_spec((1, H)),                       # LN gamma
                param_spec((1, H)),                       # LN beta
            ],
            out_specs=pl.BlockSpec((tm, H), lambda i: (i, 0)),
        ),
        compiler_params=pltpu.CompilerParams(
            dimension_semantics=("parallel",),
            vmem_limit_bytes=vmem_limit_bytes,
        ),
    )


def nontext_embeddings(features, w_fh, bias, gamma, beta, *, eps=1e-12, tm=512):
    """Fused Linear + bias + LayerNorm (MyBertNonTextEmbeddings forward, eval).

    features: (B, S, F) dense float features (the module calls them `input_ids`).
    w_fh:     (F, H) linear weight, ALREADY transposed once from nn.Linear's
              (H, F) layout, outside the per-call path.
    bias, gamma, beta: (H,)
    Returns: (B, S, H), same dtype as `features`.
    """
    B, S, F = features.shape
    Fw, H = w_fh.shape
    assert Fw == F, "weight must be (v_feature_size, v_hidden_size)"
    M = B * S

    x2d = features.reshape(M, F)
    b2d = bias.reshape(1, H)
    g2d = gamma.reshape(1, H)
    be2d = beta.reshape(1, H)

    # Adaptive row tile: single block for tiny M, big MXU-friendly tiles
    # otherwise; ragged last tile is handled by pl.cdiv + Pallas padding.
    tm_eff = int(min(tm, _round_up(M, 8)))

    # VMEM budget: 2x (tm,F) x-buffers + 2x (tm,H) out-buffers + weight +
    # params, with headroom; capped at 64 MiB so it also fits v7x VMEM.
    in_bytes = jnp.dtype(x2d.dtype).itemsize
    w_bytes = jnp.dtype(w_fh.dtype).itemsize
    need = (2 * tm_eff * F * in_bytes
            + 2 * tm_eff * H * in_bytes
            + 2 * F * H * w_bytes
            + 8 * H * 4)
    vmem_limit = int(min(64 * 1024 * 1024,
                         max(32 * 1024 * 1024, int(need * 1.5))))

    dtype_name = jnp.dtype(x2d.dtype).name
    try:
        call = _make_call(M, F, H, tm_eff, dtype_name, float(eps),
                          True, vmem_limit)
        out = jax.block_until_ready(call(x2d, w_fh, b2d, g2d, be2d))
    except Exception:
        # Fallback if single-buffering via pl.Buffered(1) is rejected by this
        # JAX/Mosaic version: identical kernel with default double buffering.
        call = _make_call(M, F, H, tm_eff, dtype_name, float(eps),
                          False, vmem_limit)
        out = jax.block_until_ready(call(x2d, w_fh, b2d, g2d, be2d))

    return out.reshape(B, S, H)


def _reference(features, w_fh, bias, gamma, beta, eps=1e-12):
    y = jnp.einsum("bsf,fh->bsh", features, w_fh) + bias
    mean = jnp.mean(y, axis=-1, keepdims=True)
    var = jnp.mean((y - mean) ** 2, axis=-1, keepdims=True)
    return (y - mean) / jnp.sqrt(var + eps) * gamma + beta


if __name__ == "__main__":
    # Small config consistent with the module's forward:
    #   v_feature_size = 64, v_hidden_size = 32, batch = 2, seq = 8
    B, S, F, H = 2, 8, 64, 32

    key = jax.random.PRNGKey(0)
    k_x, k_w, k_b, k_g, k_be = jax.random.split(key, 5)

    features = jax.random.normal(k_x, (B, S, F), dtype=jnp.float32)
    # Deterministic synthetic parameters (nn.Linear stores weight as (out, in)).
    weight_hf = jax.random.normal(k_w, (H, F), dtype=jnp.float32) * 0.02
    bias = jax.random.normal(k_b, (H,), dtype=jnp.float32) * 0.02
    gamma = jnp.ones((H,), dtype=jnp.float32) \
        + 0.01 * jax.random.normal(k_g, (H,), dtype=jnp.float32)
    beta = 0.01 * jax.random.normal(k_be, (H,), dtype=jnp.float32)

    # Hoisted, one-time weight relayout to (F, H) — not in the per-call path.
    w_fh = jnp.asarray(weight_hf.T)

    out = nontext_embeddings(features, w_fh, bias, gamma, beta)
    out = jax.block_until_ready(out)

    ref = _reference(features, w_fh, bias, gamma, beta)
    assert out.shape == (B, S, H)
    assert jnp.allclose(out, ref, atol=1e-4, rtol=1e-4), "mismatch vs reference"

    print("KERNEL_OK")
</pallas_src>

<mosaic_0001>
module attributes {stable_mosaic.version = 11 : i64} {
  func.func @_nontext_embed_kernel(%arg0: i32, %arg1: memref<16x64xf32, #tpu.memory_space<vmem>>, %arg2: memref<64x32xf32, #tpu.memory_space<vmem>>, %arg3: memref<1x32xf32, #tpu.memory_space<vmem>>, %arg4: memref<1x32xf32, #tpu.memory_space<vmem>>, %arg5: memref<1x32xf32, #tpu.memory_space<vmem>>, %arg6: memref<16x32xf32, #tpu.memory_space<vmem>>) attributes {dimension_semantics = [#tpu.dimension_semantics<parallel>], iteration_bounds = array<i64: 1>, scalar_prefetch = 0 : i64, scratch_operands = 0 : i64, tpu.core_type = #tpu.core_type<tc>, window_params = [{transform_indices = @transform_0, window_bounds = array<i64: 16, 64>}, {pipeline_mode = #tpu.pipeline_mode<synchronous>, transform_indices = @transform_1, window_bounds = array<i64: 64, 32>}, {pipeline_mode = #tpu.pipeline_mode<synchronous>, transform_indices = @transform_2, window_bounds = array<i64: 1, 32>}, {pipeline_mode = #tpu.pipeline_mode<synchronous>, transform_indices = @transform_3, window_bounds = array<i64: 1, 32>}, {pipeline_mode = #tpu.pipeline_mode<synchronous>, transform_indices = @transform_4, window_bounds = array<i64: 1, 32>}, {transform_indices = @transform_5, window_bounds = array<i64: 16, 32>}]} {
    %c0 = arith.constant 0 : index
    %c0_0 = arith.constant 0 : index
    %0 = vector.load %arg1[%c0, %c0_0] : memref<16x64xf32, #tpu.memory_space<vmem>>, vector<16x64xf32>
    %c0_1 = arith.constant 0 : index
    %c0_2 = arith.constant 0 : index
    %1 = vector.load %arg2[%c0_1, %c0_2] : memref<64x32xf32, #tpu.memory_space<vmem>>, vector<64x32xf32>
    %cst = arith.constant dense<0.000000e+00> : vector<16x32xf32>
    %2 = tpu.matmul %0, %1, %cst {dimension_numbers = #tpu.dot_dimension_numbers<[1], [0], [0], [1], [0, 0, 1, 1], [], []>} : vector<16x64xf32>, vector<64x32xf32>, vector<16x32xf32> -> vector<16x32xf32>
    %c0_3 = arith.constant 0 : index
    %c0_4 = arith.constant 0 : index
    %3 = vector.load %arg3[%c0_3, %c0_4] : memref<1x32xf32, #tpu.memory_space<vmem>>, vector<1x32xf32>
    %4 = vector.broadcast %3 : vector<1x32xf32> to vector<16x32xf32>
    %5 = arith.addf %2, %4 : vector<16x32xf32>
    %cst_5 = arith.constant dense<0.000000e+00> : vector<16xf32>
    %6 = vector.multi_reduction <add>, %5, %cst_5 [1] : vector<16x32xf32> to vector<16xf32>
    %7 = vector.shape_cast %6 : vector<16xf32> to vector<16x1xf32>
    %cst_6 = arith.constant 3.200000e+01 : f32
    %8 = vector.broadcast %cst_6 : f32 to vector<16x1xf32>
    %9 = arith.divf %7, %8 : vector<16x1xf32>
    %10 = vector.broadcast %9 : vector<16x1xf32> to vector<16x32xf32>
    %11 = arith.subf %5, %10 : vector<16x32xf32>
    %12 = arith.mulf %11, %11 : vector<16x32xf32>
    %cst_7 = arith.constant dense<0.000000e+00> : vector<16xf32>
    %13 = vector.multi_reduction <add>, %12, %cst_7 [1] : vector<16x32xf32> to vector<16xf32>
    %14 = vector.shape_cast %13 : vector<16xf32> to vector<16x1xf32>
    %cst_8 = arith.constant 3.200000e+01 : f32
    %15 = vector.broadcast %cst_8 : f32 to vector<16x1xf32>
    %16 = arith.divf %14, %15 : vector<16x1xf32>
    %cst_9 = arith.constant 9.99999996E-13 : f32
    %17 = vector.broadcast %cst_9 : f32 to vector<16x1xf32>
    %18 = arith.addf %16, %17 : vector<16x1xf32>
    %19 = math.rsqrt %18 : vector<16x1xf32>
    %20 = vector.broadcast %19 : vector<16x1xf32> to vector<16x32xf32>
    %21 = arith.mulf %11, %20 : vector<16x32xf32>
    %c0_10 = arith.constant 0 : index
    %c0_11 = arith.constant 0 : index
    %22 = vector.load %arg4[%c0_10, %c0_11] : memref<1x32xf32, #tpu.memory_space<vmem>>, vector<1x32xf32>
    %23 = vector.broadcast %22 : vector<1x32xf32> to vector<16x32xf32>
    %24 = arith.mulf %21, %23 : vector<16x32xf32>
    %c0_12 = arith.constant 0 : index
    %c0_13 = arith.constant 0 : index
    %25 = vector.load %arg5[%c0_12, %c0_13] : memref<1x32xf32, #tpu.memory_space<vmem>>, vector<1x32xf32>
    %26 = vector.broadcast %25 : vector<1x32xf32> to vector<16x32xf32>
    %27 = arith.addf %24, %26 : vector<16x32xf32>
    %c0_14 = arith.constant 0 : index
    %c0_15 = arith.constant 0 : index
    %28 = vector.load %arg6[%c0_14, %c0_15] : memref<16x32xf32, #tpu.memory_space<vmem>>, vector<16x32xf32>
    tpu.vector_store %arg6[%c0_14, %c0_15], %27 {strides = array<i32>} : memref<16x32xf32, #tpu.memory_space<vmem>>, vector<16x32xf32>,
    return
  }
  func.func @transform_0(%arg0: i32) -> (i32, i32) {
    %c0_i32 = arith.constant 0 : i32
    %c0_i32_0 = arith.constant 0 : i32
    return %arg0, %c0_i32 : i32, i32
  }
  func.func @transform_1(%arg0: i32) -> (i32, i32) {
    %c0_i32 = arith.constant 0 : i32
    %c0_i32_0 = arith.constant 0 : i32
    %c0_i32_1 = arith.constant 0 : i32
    return %c0_i32, %c0_i32_0 : i32, i32
  }
  func.func @transform_2(%arg0: i32) -> (i32, i32) {
    %c0_i32 = arith.constant 0 : i32
    %c0_i32_0 = arith.constant 0 : i32
    %c0_i32_1 = arith.constant 0 : i32
    return %c0_i32, %c0_i32_0 : i32, i32
  }
  func.func @transform_3(%arg0: i32) -> (i32, i32) {
    %c0_i32 = arith.constant 0 : i32
    %c0_i32_0 = arith.constant 0 : i32
    %c0_i32_1 = arith.constant 0 : i32
    return %c0_i32, %c0_i32_0 : i32, i32
  }
  func.func @transform_4(%arg0: i32) -> (i32, i32) {
    %c0_i32 = arith.constant 0 : i32
    %c0_i32_0 = arith.constant 0 : i32
    %c0_i32_1 = arith.constant 0 : i32
    return %c0_i32, %c0_i32_0 : i32, i32
  }
  func.func @transform_5(%arg0: i32) -> (i32, i32) {
    %c0_i32 = arith.constant 0 : i32
    %c0_i32_0 = arith.constant 0 : i32
    return %arg0, %c0_i32 : i32, i32
  }
}

module attributes {stable_mosaic.version = 11 : i64} {
  func.func @_nontext_embed_kernel(%arg0: i32, %arg1: memref<16x64xf32, #tpu.memory_space<vmem>>, %arg2: memref<64x32xf32, #tpu.memory_space<vmem>>, %arg3: memref<1x32xf32, #tpu.memory_space<vmem>>, %arg4: memref<1x32xf32, #tpu.memory_space<vmem>>, %arg5: memref<1x32xf32, #tpu.memory_space<vmem>>, %arg6: memref<16x32xf32, #tpu.memory_space<vmem>>) attributes {dimension_semantics = [#tpu.dimension_semantics<parallel>], iteration_bounds = array<i64: 1>, scalar_prefetch = 0 : i64, scratch_operands = 0 : i64, tpu.core_type = #tpu.core_type<tc>, window_params = [{transform_indices = @transform_0, window_bounds = array<i64: 16, 64>}, {pipeline_mode = #tpu.pipeline_mode<synchronous>, transform_indices = @transform_1, window_bounds = array<i64: 64, 32>}, {pipeline_mode = #tpu.pipeline_mode<synchronous>, transform_indices = @transform_2, window_bounds = array<i64: 1, 32>}, {pipeline_mode = #tpu.pipeline_mode<synchronous>, transform_indices = @transform_3, window_bounds = array<i64: 1, 32>}, {pipeline_mode = #tpu.pipeline_mode<synchronous>, transform_indices = @transform_4, window_bounds = array<i64: 1, 32>}, {transform_indices = @transform_5, window_bounds = array<i64: 16, 32>}]} {
    %c0 = arith.constant 0 : index
    %c0_0 = arith.constant 0 : index
    %0 = vector.load %arg1[%c0, %c0_0] : memref<16x64xf32, #tpu.memory_space<vmem>>, vector<16x64xf32>
    %c0_1 = arith.constant 0 : index
    %c0_2 = arith.constant 0 : index
    %1 = vector.load %arg2[%c0_1, %c0_2] : memref<64x32xf32, #tpu.memory_space<vmem>>, vector<64x32xf32>
    %cst = arith.constant dense<0.000000e+00> : vector<16x32xf32>
    %2 = tpu.matmul %0, %1, %cst {dimension_numbers = #tpu.dot_dimension_numbers<[1], [0], [0], [1], [0, 0, 1, 1], [], []>} : vector<16x64xf32>, vector<64x32xf32>, vector<16x32xf32> -> vector<16x32xf32>
    %c0_3 = arith.constant 0 : index
    %c0_4 = arith.constant 0 : index
    %3 = vector.load %arg3[%c0_3, %c0_4] : memref<1x32xf32, #tpu.memory_space<vmem>>, vector<1x32xf32>
    %4 = vector.broadcast %3 : vector<1x32xf32> to vector<16x32xf32>
    %5 = arith.addf %2, %4 : vector<16x32xf32>
    %cst_5 = arith.constant dense<0.000000e+00> : vector<16xf32>
    %6 = vector.multi_reduction <add>, %5, %cst_5 [1] : vector<16x32xf32> to vector<16xf32>
    %7 = vector.shape_cast %6 : vector<16xf32> to vector<16x1xf32>
    %cst_6 = arith.constant 3.200000e+01 : f32
    %8 = vector.broadcast %cst_6 : f32 to vector<16x1xf32>
    %9 = arith.divf %7, %8 : vector<16x1xf32>
    %10 = vector.broadcast %9 : vector<16x1xf32> to vector<16x32xf32>
    %11 = arith.subf %5, %10 : vector<16x32xf32>
    %12 = arith.mulf %11, %11 : vector<16x32xf32>
    %cst_7 = arith.constant dense<0.000000e+00> : vector<16xf32>
    %13 = vector.multi_reduction <add>, %12, %cst_7 [1] : vector<16x32xf32> to vector<16xf32>
    %14 = vector.shape_cast %13 : vector<16xf32> to vector<16x1xf32>
    %cst_8 = arith.constant 3.200000e+01 : f32
    %15 = vector.broadcast %cst_8 : f32 to vector<16x1xf32>
    %16 = arith.divf %14, %15 : vector<16x1xf32>
    %cst_9 = arith.constant 9.99999996E-13 : f32
    %17 = vector.broadcast %cst_9 : f32 to vector<16x1xf32>
    %18 = arith.addf %16, %17 : vector<16x1xf32>
    %19 = math.rsqrt %18 : vector<16x1xf32>
    %20 = vector.broadcast %19 : vector<16x1xf32> to vector<16x32xf32>
    %21 = arith.mulf %11, %20 : vector<16x32xf32>
    %c0_10 = arith.constant 0 : index
    %c0_11 = arith.constant 0 : index
    %22 = vector.load %arg4[%c0_10, %c0_11] : memref<1x32xf32, #tpu.memory_space<vmem>>, vector<1x32xf32>
    %23 = vector.broadcast %22 : vector<1x32xf32> to vector<16x32xf32>
    %24 = arith.mulf %21, %23 : vector<16x32xf32>
    %c0_12 = arith.constant 0 : index
    %c0_13 = arith.constant 0 : index
    %25 = vector.load %arg5[%c0_12, %c0_13] : memref<1x32xf32, #tpu.memory_space<vmem>>, vector<1x32xf32>
    %26 = vector.broadcast %25 : vector<1x32xf32> to vector<16x32xf32>
    %27 = arith.addf %24, %26 : vector<16x32xf32>
    %c0_14 = arith.constant 0 : index
    %c0_15 = arith.constant 0 : index
    %28 = vector.load %arg6[%c0_14, %c0_15] : memref<16x32xf32, #tpu.memory_space<vmem>>, vector<16x32xf32>
    tpu.vector_store %arg6[%c0_14, %c0_15], %27 {strides = array<i32>} : memref<16x32xf32, #tpu.memory_space<vmem>>, vector<16x32xf32>,
    return
  }
  func.func @transform_0(%arg0: i32) -> (i32, i32) {
    %c0_i32 = arith.constant 0 : i32
    %c0_i32_0 = arith.constant 0 : i32
    return %arg0, %c0_i32 : i32, i32
  }
  func.func @transform_1(%arg0: i32) -> (i32, i32) {
    %c0_i32 = arith.constant 0 : i32
    %c0_i32_0 = arith.constant 0 : i32
    %c0_i32_1 = arith.constant 0 : i32
    return %c0_i32, %c0_i32_0 : i32, i32
  }
  func.func @transform_2(%arg0: i32) -> (i32, i32) {
    %c0_i32 = arith.constant 0 : i32
    %c0_i32_0 = arith.constant 0 : i32
    %c0_i32_1 = arith.constant 0 : i32
    return %c0_i32, %c0_i32_0 : i32, i32
  }
  func.func @transform_3(%arg0: i32) -> (i32, i32) {
    %c0_i32 = arith.constant 0 : i32
    %c0_i32_0 = arith.constant 0 : i32
    %c0_i32_1 = arith.constant 0 : i32
    return %c0_i32, %c0_i32_0 : i32, i32
  }
  func.func @transform_4(%arg0: i32) -> (i32, i32) {
    %c0_i32 = arith.constant 0 : i32
    %c0_i32_0 = arith.constant 0 : i32
    %c0_i32_1 = arith.constant 0 : i32
    return %c0_i32, %c0_i32_0 : i32, i32
  }
  func.func @transform_5(%arg0: i32) -> (i32, i32) {
    %c0_i32 = arith.constant 0 : i32
    %c0_i32_0 = arith.constant 0 : i32
    return %arg0, %c0_i32 : i32, i32
  }
}

</mosaic_0001>

<llo_original>
// kernel: tpu_custom_call.1
$region0: #{tpu_custom_call.1}
  #allocation0 [shape = 'u32[]', space=smem, size = 0x4, offset = 0x4, fixed_abs, tag = 'smem constant byte address 0x4 - core index']
  #allocation1 [shape = 'u32[144,128]{1,0:T(1,128)}', space=vmem, size = 0x12000, scoped, tag = 'internal scratch']
  %s0 = inlined_call_operand.vmem [shape: f32[16,64], index: 0, kind: input, shape index: {}]
  %s1 = inlined_call_operand.vmem [shape: f32[64,32], index: 1, kind: input, shape index: {}]
  %s2 = inlined_call_operand.vmem [shape: f32[1,32], index: 2, kind: input, shape index: {}]
  %s3 = inlined_call_operand.vmem [shape: f32[1,32], index: 3, kind: input, shape index: {}]
  %s4 = inlined_call_operand.vmem [shape: f32[1,32], index: 4, kind: input, shape index: {}]
  %s5 = inlined_call_operand.hbm [shape: f32[16,32], index: 5, kind: output, shape index: {}]
  %s6 = sld [smem:[#allocation0]]
  $region30: #{tpu_custom_call.1} parent=0
    _
  %s8 = ssub.s32 1, %s6
  %s9 = scalar_select 0, %s8, %s6
  $region1: #{tpu_custom_call.1} parent=0
    #allocation2 [shape = 'u8[8192]{0}', space=vmem, size = 0x2000, scoped, tag = 'output window, operand 0, single buffered']
    #allocation3 [shape = 's32[1]{0}', space=sflag, size = 0x4, scoped, tag = 'scoped memory for tpu_custom_call.1']
    %10 = vsyncpa [#allocation3], 0
    // Predicated region
    $region2: #{tpu_custom_call.1} parent=1 // pred_check
      _
    $region3: #{tpu_custom_call.1} parent=1 // pred_check_branch
      %12 = sbr.rel (0) target = $region5
    $region4: #{tpu_custom_call.1} parent=1 // pred_region
      _
    $region5: #{tpu_custom_call.1} parent=1 // pred_fallthru
      _
    // Predicated region
    $region6: #{tpu_custom_call.1} parent=1 // pred_check
      _
    $region7: #{tpu_custom_call.1} parent=1 // pred_check_branch
      %14 = sbr.rel (0) target = $region9
    $region8: #{tpu_custom_call.1} parent=1 // pred_region
      _
    $region9: #{tpu_custom_call.1} parent=1 // pred_fallthru
      _
    // Predicated region
    $region10: #{tpu_custom_call.1} parent=1 // pred_check
      _
    $region11: #{tpu_custom_call.1} parent=1 // pred_check_branch
      %16 = sbr.rel (0) target = $region13
    $region12: #{tpu_custom_call.1} parent=1 // pred_region
      _
    $region13: #{tpu_custom_call.1} parent=1 // pred_fallthru
      _
    // Predicated region
    $region14: #{tpu_custom_call.1} parent=1 // pred_check
      _
    $region15: #{tpu_custom_call.1} parent=1 // pred_check_branch
      %18 = sbr.rel (0) target = $region17
    $region16: #{tpu_custom_call.1} parent=1 // pred_region
      _
    $region17: #{tpu_custom_call.1} parent=1 // pred_fallthru
      _
    // Predicated region
    $region18: #{tpu_custom_call.1} parent=1 // pred_check
      _
    $region19: #{tpu_custom_call.1} parent=1 // pred_check_branch
      %20 = sbr.rel (0) target = $region21
    $region20: #{tpu_custom_call.1} parent=1 // pred_region
      _
    $region21: #{tpu_custom_call.1} parent=1 // pred_fallthru
      _
    %v21 = vld [vmem:[%s0] sm:$0xff]
    %v22 = vld [vmem:[%s0 + $0x8] sm:$0xff]
    %v23 = vld [vmem:[%s1] sm:$0xff]
    %v24 = vld [vmem:[%s1 + $0x8] sm:$0xff]
    %v25 = vld [vmem:[%s1 + $0x10] sm:$0xff]
    %v26 = vld [vmem:[%s1 + $0x18] sm:$0xff]
    %v27 = vld [vmem:[%s1 + $0x20] sm:$0xff]
    %v28 = vld [vmem:[%s1 + $0x28] sm:$0xff]
    %v29 = vld [vmem:[%s1 + $0x30] sm:$0xff]
    %v30 = vld [vmem:[%s1 + $0x38] sm:$0xff]
    %v31 = vld [vmem:[%s2] sm:$0x1]
    %v33 = vlaneseq
    %v34 = vshrl.u32 %v33, 7
    %v35 = vsub.s32 0, %v34
    %v36 = vrot.slane %v31, %v35
    %vm38 = vcmask 523264
    %v40 = vsel %vm38, %v21, 0
    %v43 = vsel %vm38, %v22, 0
    %45 = vmatprep.subr.mxu0 0.0
    %46 = vmatpush1.msra.mxu0 0.0
    %47 = vmatprep.subr.mxu0 0.0
    %48 = vmatpush1.msra.mxu0 0.0
    %49 = vmatprep.subr.mxu0 0.0
    %50 = vmatpush1.msra.mxu0 0.0
    %51 = vmatprep.subr.mxu0 0.0
    %52 = vmatpush1.msra.mxu0 0.0
    %53 = vmatprep.subr.mxu0 0.0
    %54 = vmatpush1.msra.mxu0 0.0
    %55 = vmatprep.subr.mxu0 0.0
    %56 = vmatpush1.msra.mxu0 0.0
    %57 = vmatprep.subr.mxu0 0.0
    %58 = vmatpush1.msra.mxu0 0.0
    %59 = vmatprep.subr.mxu0 0.0
    %60 = vmatpush1.msra.mxu0 0.0
    %61 = vmatprep.subr.mxu0 0.0
    %62 = vmatpush1.msra.mxu0 %v30
    %63 = vmatprep.subr.mxu0 0.0
    %64 = vmatpush1.msra.mxu0 %v29
    %65 = vmatprep.subr.mxu0 0.0
    %66 = vmatpush1.msra.mxu0 %v28
    %67 = vmatprep.subr.mxu0 0.0
    %68 = vmatpush1.msra.mxu0 %v27
    %69 = vmatprep.subr.mxu0 0.0
    %70 = vmatpush1.msra.mxu0 %v26
    %71 = vmatprep.subr.mxu0 0.0
    %72 = vmatpush1.msra.mxu0 %v25
    %73 = vmatprep.subr.mxu0 0.0
    %74 = vmatpush1.msra.mxu0 %v24
    %75 = vmatprep.subr.mxu0 0.0
    %76 = vmatpush1.msra.mxu0 %v23
    %77 = vmatprep.subr.mxu0 0.0
    %78 = vmatpush2.msra.mxu0 0.0
    %79 = vmatprep.subr.mxu0 0.0
    %80 = vmatpush2.msra.mxu0 0.0
    %81 = vmatprep.subr.mxu0 0.0
    %82 = vmatpush2.msra.mxu0 0.0
    %83 = vmatprep.subr.mxu0 0.0
    %84 = vmatpush2.msra.mxu0 0.0
    %85 = vmatprep.subr.mxu0 0.0
    %86 = vmatpush2.msra.mxu0 0.0
    %87 = vmatprep.subr.mxu0 0.0
    %88 = vmatpush2.msra.mxu0 0.0
    %89 = vmatprep.subr.mxu0 0.0
    %90 = vmatpush2.msra.mxu0 0.0
    %91 = vmatprep.subr.mxu0 0.0
    %92 = vmatpush2.msra.mxu0 0.0
    %93 = vmatprep.subr.mxu0 0.0
    %94 = vmatpush2.msra.mxu0 0.0
    %95 = vmatprep.subr.mxu0 0.0
    %96 = vmatpush2.msra.mxu0 0.0
    %97 = vmatprep.subr.mxu0 0.0
    %98 = vmatpush2.msra.mxu0 0.0
    %99 = vmatprep.subr.mxu0 0.0
    %100 = vmatpush2.msra.mxu0 0.0
    %101 = vmatprep.subr.mxu0 0.0
    %102 = vmatpush2.msra.mxu0 0.0
    %103 = vmatprep.subr.mxu0 0.0
    %104 = vmatpush2.msra.mxu0 0.0
    %105 = vmatprep.subr.mxu0 0.0
    %106 = vmatpush2.msra.mxu0 0.0
    %107 = vmatprep.subr.mxu0 0.0
    %108 = vmatpush2.msra.mxu0 0.0
    %109 = vmatprep.mubr.f32.mxu0 0.0
    %110 = vmatmul.mubr.f32.gmra.mxu0 %v40
    %v111 = vpop.f32.mrf.mxu0
    %v112 = vadd.f32 %v36, %v111
    %v113 = vpop.f32.mrf.mxu0
    %114 = vmatprep.mubr.f32.mxu0 0.0
    %115 = vmatmul.mubr.f32.gmra.mxu0 %v43
    %v116 = vpop.f32.mrf.mxu0
    %v117 = vadd.f32 %v36, %v116
    %v118 = vpop.f32.mrf.mxu0
    %119 = vdwg.mxu0
    %vm120 = vcmask 261120
    %v121 = vsel %vm120, %v112, 0.0
    %122 = vadd.xlane.f32.xlu0 %v121
    %v123 = vpop.xlane.xlu0 %122
    %v124 = vsel %vm120, %v117, 0.0
    %125 = vadd.xlane.f32.xlu0 %v124
    %v126 = vpop.xlane.xlu0 %125
    %v127 = vrcp.pop 32.0
    %v128 = vmul.f32 %v123, %v127
    %v129 = vmul.f32 %v126, %v127
    %v130 = vsub.f32 %v112, %v128
    %v131 = vsub.f32 %v117, %v129
    %v132 = vmul.f32 %v130, %v130
    %v133 = vmul.f32 %v131, %v131
    %v134 = vsel %vm120, %v132, 0.0
    %135 = vadd.xlane.f32.xlu0 %v134
    %v136 = vpop.xlane.xlu0 %135
    %v137 = vsel %vm120, %v133, 0.0
    %138 = vadd.xlane.f32.xlu0 %v137
    %v139 = vpop.xlane.xlu0 %138
    %v140 = vmul.f32 %v136, %v127
    %v141 = vmul.f32 %v139, %v127
    %v142 = vadd.f32 %v140, 1e-12
    %v143 = vadd.f32 %v141, 1e-12
    %v144 = vrsqrt.pop %v142
    %v145 = vrsqrt.pop %v143
    %v146 = vmul.f32 %v130, %v144
    %v147 = vmul.f32 %v131, %v145
    %v148 = vld [vmem:[%s3] sm:$0x1]
    %v150 = vlaneseq
    %v151 = vshrl.u32 %v150, 7
    %v152 = vsub.s32 0, %v151
    %v153 = vrot.slane %v148, %v152
    %v155 = vmul.f32 %v146, %v153
    %v156 = vmul.f32 %v147, %v153
    %v157 = vld [vmem:[%s4] sm:$0x1]
    %v159 = vlaneseq
    %v160 = vshrl.u32 %v159, 7
    %v161 = vsub.s32 0, %v160
    %v162 = vrot.slane %v157, %v161
    %v164 = vadd.f32 %v155, %v162
    %v165 = vadd.f32 %v156, %v162
    %166 = vst.msk [vmem:[#allocation2] sm:$0xff] %vm120, %v164
    %167 = vst.msk [vmem:[#allocation2 + $0x8] sm:$0xff] %vm120, %v165
    // Predicated region
    $region22: #{tpu_custom_call.1} parent=1 // pred_check
      _
    $region23: #{tpu_custom_call.1} parent=1 // pred_check_branch
      %169 = sbr.rel (0) target = $region25
    $region24: #{tpu_custom_call.1} parent=1 // pred_region
      %s171 = ssub.s32 256, 256
      %172 = vsyncadd [#allocation3], %s171
      %s173 = sshll.u32 [#allocation2], 4
      %s174 = int_to_ptr.vmem [resolvable:$true] %s173
      %179 = dma.vmem_to_hbm [thread:$0]  %s174, 256, %s5, [#allocation3], 128, 128, 8
    $region25: #{tpu_custom_call.1} parent=1 // pred_fallthru
      _
    // Predicated region
    $region26: #{tpu_custom_call.1} parent=1 // pred_check
      _
    $region27: #{tpu_custom_call.1} parent=1 // pred_check_branch
      %181 = sbr.rel (0) target = $region29
    $region28: #{tpu_custom_call.1} parent=1 // pred_region
      %182 = dma.done [#allocation3], 256
    $region29: #{tpu_custom_call.1} parent=1 // pred_fallthru
      _
    %183 = vsyncpa [#allocation3], 1

// kernel: tpu_custom_call.1
$region0: #{tpu_custom_call.1}
  #allocation0 [shape = 'u32[]', space=smem, size = 0x4, offset = 0x4, fixed_abs, tag = 'smem constant byte address 0x4 - core index']
  #allocation1 [shape = 'u32[144,128]{1,0:T(1,128)}', space=vmem, size = 0x12000, scoped, tag = 'internal scratch']
  %s0 = inlined_call_operand.vmem [shape: f32[16,64], index: 0, kind: input, shape index: {}]
  %s1 = inlined_call_operand.vmem [shape: f32[64,32], index: 1, kind: input, shape index: {}]
  %s2 = inlined_call_operand.vmem [shape: f32[1,32], index: 2, kind: input, shape index: {}]
  %s3 = inlined_call_operand.vmem [shape: f32[1,32], index: 3, kind: input, shape index: {}]
  %s4 = inlined_call_operand.vmem [shape: f32[1,32], index: 4, kind: input, shape index: {}]
  %s5 = inlined_call_operand.hbm [shape: f32[16,32], index: 5, kind: output, shape index: {}]
  %s6 = sld [smem:[#allocation0]]
  $region30: #{tpu_custom_call.1} parent=0
    _
  %s8 = ssub.s32 1, %s6
  %s9 = scalar_select 0, %s8, %s6
  $region1: #{tpu_custom_call.1} parent=0
    #allocation2 [shape = 'u8[8192]{0}', space=vmem, size = 0x2000, scoped, tag = 'output window, operand 0, single buffered']
    #allocation3 [shape = 's32[1]{0}', space=sflag, size = 0x4, scoped, tag = 'scoped memory for tpu_custom_call.1']
    %10 = vsyncpa [#allocation3], 0
    // Predicated region
    $region2: #{tpu_custom_call.1} parent=1 // pred_check
      _
    $region3: #{tpu_custom_call.1} parent=1 // pred_check_branch
      %12 = sbr.rel (0) target = $region5
    $region4: #{tpu_custom_call.1} parent=1 // pred_region
      _
    $region5: #{tpu_custom_call.1} parent=1 // pred_fallthru
      _
    // Predicated region
    $region6: #{tpu_custom_call.1} parent=1 // pred_check
      _
    $region7: #{tpu_custom_call.1} parent=1 // pred_check_branch
      %14 = sbr.rel (0) target = $region9
    $region8: #{tpu_custom_call.1} parent=1 // pred_region
      _
    $region9: #{tpu_custom_call.1} parent=1 // pred_fallthru
      _
    // Predicated region
    $region10: #{tpu_custom_call.1} parent=1 // pred_check
      _
    $region11: #{tpu_custom_call.1} parent=1 // pred_check_branch
      %16 = sbr.rel (0) target = $region13
    $region12: #{tpu_custom_call.1} parent=1 // pred_region
      _
    $region13: #{tpu_custom_call.1} parent=1 // pred_fallthru
      _
    // Predicated region
    $region14: #{tpu_custom_call.1} parent=1 // pred_check
      _
    $region15: #{tpu_custom_call.1} parent=1 // pred_check_branch
      %18 = sbr.rel (0) target = $region17
    $region16: #{tpu_custom_call.1} parent=1 // pred_region
      _
    $region17: #{tpu_custom_call.1} parent=1 // pred_fallthru
      _
    // Predicated region
    $region18: #{tpu_custom_call.1} parent=1 // pred_check
      _
    $region19: #{tpu_custom_call.1} parent=1 // pred_check_branch
      %20 = sbr.rel (0) target = $region21
    $region20: #{tpu_custom_call.1} parent=1 // pred_region
      _
    $region21: #{tpu_custom_call.1} parent=1 // pred_fallthru
      _
    %v21 = vld [vmem:[%s0] sm:$0xff]
    %v22 = vld [vmem:[%s0 + $0x8] sm:$0xff]
    %v23 = vld [vmem:[%s1] sm:$0xff]
    %v24 = vld [vmem:[%s1 + $0x8] sm:$0xff]
    %v25 = vld [vmem:[%s1 + $0x10] sm:$0xff]
    %v26 = vld [vmem:[%s1 + $0x18] sm:$0xff]
    %v27 = vld [vmem:[%s1 + $0x20] sm:$0xff]
    %v28 = vld [vmem:[%s1 + $0x28] sm:$0xff]
    %v29 = vld [vmem:[%s1 + $0x30] sm:$0xff]
    %v30 = vld [vmem:[%s1 + $0x38] sm:$0xff]
    %v31 = vld [vmem:[%s2] sm:$0x1]
    %v33 = vlaneseq
    %v34 = vshrl.u32 %v33, 7
    %v35 = vsub.s32 0, %v34
    %v36 = vrot.slane %v31, %v35
    %vm38 = vcmask 523264
    %v40 = vsel %vm38, %v21, 0
    %v43 = vsel %vm38, %v22, 0
    %45 = vmatprep.subr.mxu0 0.0
    %46 = vmatpush1.msra.mxu0 0.0
    %47 = vmatprep.subr.mxu0 0.0
    %48 = vmatpush1.msra.mxu0 0.0
    %49 = vmatprep.subr.mxu0 0.0
    %50 = vmatpush1.msra.mxu0 0.0
    %51 = vmatprep.subr.mxu0 0.0
    %52 = vmatpush1.msra.mxu0 0.0
    %53 = vmatprep.subr.mxu0 0.0
    %54 = vmatpush1.msra.mxu0 0.0
    %55 = vmatprep.subr.mxu0 0.0
    %56 = vmatpush1.msra.mxu0 0.0
    %57 = vmatprep.subr.mxu0 0.0
    %58 = vmatpush1.msra.mxu0 0.0
    %59 = vmatprep.subr.mxu0 0.0
    %60 = vmatpush1.msra.mxu0 0.0
    %61 = vmatprep.subr.mxu0 0.0
    %62 = vmatpush1.msra.mxu0 %v30
    %63 = vmatprep.subr.mxu0 0.0
    %64 = vmatpush1.msra.mxu0 %v29
    %65 = vmatprep.subr.mxu0 0.0
    %66 = vmatpush1.msra.mxu0 %v28
    %67 = vmatprep.subr.mxu0 0.0
    %68 = vmatpush1.msra.mxu0 %v27
    %69 = vmatprep.subr.mxu0 0.0
    %70 = vmatpush1.msra.mxu0 %v26
    %71 = vmatprep.subr.mxu0 0.0
    %72 = vmatpush1.msra.mxu0 %v25
    %73 = vmatprep.subr.mxu0 0.0
    %74 = vmatpush1.msra.mxu0 %v24
    %75 = vmatprep.subr.mxu0 0.0
    %76 = vmatpush1.msra.mxu0 %v23
    %77 = vmatprep.subr.mxu0 0.0
    %78 = vmatpush2.msra.mxu0 0.0
    %79 = vmatprep.subr.mxu0 0.0
    %80 = vmatpush2.msra.mxu0 0.0
    %81 = vmatprep.subr.mxu0 0.0
    %82 = vmatpush2.msra.mxu0 0.0
    %83 = vmatprep.subr.mxu0 0.0
    %84 = vmatpush2.msra.mxu0 0.0
    %85 = vmatprep.subr.mxu0 0.0
    %86 = vmatpush2.msra.mxu0 0.0
    %87 = vmatprep.subr.mxu0 0.0
    %88 = vmatpush2.msra.mxu0 0.0
    %89 = vmatprep.subr.mxu0 0.0
    %90 = vmatpush2.msra.mxu0 0.0
    %91 = vmatprep.subr.mxu0 0.0
    %92 = vmatpush2.msra.mxu0 0.0
    %93 = vmatprep.subr.mxu0 0.0
    %94 = vmatpush2.msra.mxu0 0.0
    %95 = vmatprep.subr.mxu0 0.0
    %96 = vmatpush2.msra.mxu0 0.0
    %97 = vmatprep.subr.mxu0 0.0
    %98 = vmatpush2.msra.mxu0 0.0
    %99 = vmatprep.subr.mxu0 0.0
    %100 = vmatpush2.msra.mxu0 0.0
    %101 = vmatprep.subr.mxu0 0.0
    %102 = vmatpush2.msra.mxu0 0.0
    %103 = vmatprep.subr.mxu0 0.0
    %104 = vmatpush2.msra.mxu0 0.0
    %105 = vmatprep.subr.mxu0 0.0
    %106 = vmatpush2.msra.mxu0 0.0
    %107 = vmatprep.subr.mxu0 0.0
    %108 = vmatpush2.msra.mxu0 0.0
    %109 = vmatprep.mubr.f32.mxu0 0.0
    %110 = vmatmul.mubr.f32.gmra.mxu0 %v40
    %v111 = vpop.f32.mrf.mxu0
    %v112 = vadd.f32 %v36, %v111
    %v113 = vpop.f32.mrf.mxu0
    %114 = vmatprep.mubr.f32.mxu0 0.0
    %115 = vmatmul.mubr.f32.gmra.mxu0 %v43
    %v116 = vpop.f32.mrf.mxu0
    %v117 = vadd.f32 %v36, %v116
    %v118 = vpop.f32.mrf.mxu0
    %119 = vdwg.mxu0
    %vm120 = vcmask 261120
    %v121 = vsel %vm120, %v112, 0.0
    %122 = vadd.xlane.f32.xlu0 %v121
    %v123 = vpop.xlane.xlu0 %122
    %v124 = vsel %vm120, %v117, 0.0
    %125 = vadd.xlane.f32.xlu0 %v124
    %v126 = vpop.xlane.xlu0 %125
    %v127 = vrcp.pop 32.0
    %v128 = vmul.f32 %v123, %v127
    %v129 = vmul.f32 %v126, %v127
    %v130 = vsub.f32 %v112, %v128
    %v131 = vsub.f32 %v117, %v129
    %v132 = vmul.f32 %v130, %v130
    %v133 = vmul.f32 %v131, %v131
    %v134 = vsel %vm120, %v132, 0.0
    %135 = vadd.xlane.f32.xlu0 %v134
    %v136 = vpop.xlane.xlu0 %135
    %v137 = vsel %vm120, %v133, 0.0
    %138 = vadd.xlane.f32.xlu0 %v137
    %v139 = vpop.xlane.xlu0 %138
    %v140 = vmul.f32 %v136, %v127
    %v141 = vmul.f32 %v139, %v127
    %v142 = vadd.f32 %v140, 1e-12
    %v143 = vadd.f32 %v141, 1e-12
    %v144 = vrsqrt.pop %v142
    %v145 = vrsqrt.pop %v143
    %v146 = vmul.f32 %v130, %v144
    %v147 = vmul.f32 %v131, %v145
    %v148 = vld [vmem:[%s3] sm:$0x1]
    %v150 = vlaneseq
    %v151 = vshrl.u32 %v150, 7
    %v152 = vsub.s32 0, %v151
    %v153 = vrot.slane %v148, %v152
    %v155 = vmul.f32 %v146, %v153
    %v156 = vmul.f32 %v147, %v153
    %v157 = vld [vmem:[%s4] sm:$0x1]
    %v159 = vlaneseq
    %v160 = vshrl.u32 %v159, 7
    %v161 = vsub.s32 0, %v160
    %v162 = vrot.slane %v157, %v161
    %v164 = vadd.f32 %v155, %v162
    %v165 = vadd.f32 %v156, %v162
    %166 = vst.msk [vmem:[#allocation2] sm:$0xff] %vm120, %v164
    %167 = vst.msk [vmem:[#allocation2 + $0x8] sm:$0xff] %vm120, %v165
    // Predicated region
    $region22: #{tpu_custom_call.1} parent=1 // pred_check
      _
    $region23: #{tpu_custom_call.1} parent=1 // pred_check_branch
      %169 = sbr.rel (0) target = $region25
    $region24: #{tpu_custom_call.1} parent=1 // pred_region
      %s171 = ssub.s32 256, 256
      %172 = vsyncadd [#allocation3], %s171
      %s173 = sshll.u32 [#allocation2], 4
      %s174 = int_to_ptr.vmem [resolvable:$true] %s173
      %179 = dma.vmem_to_hbm [thread:$0]  %s174, 256, %s5, [#allocation3], 128, 128, 8
    $region25: #{tpu_custom_call.1} parent=1 // pred_fallthru
      _
    // Predicated region
    $region26: #{tpu_custom_call.1} parent=1 // pred_check
      _
    $region27: #{tpu_custom_call.1} parent=1 // pred_check_branch
      %181 = sbr.rel (0) target = $region29
    $region28: #{tpu_custom_call.1} parent=1 // pred_region
      %182 = dma.done [#allocation3], 256
    $region29: #{tpu_custom_call.1} parent=1 // pred_fallthru
      _
    %183 = vsyncpa [#allocation3], 1

</llo_original>
